<compile_context>
chip_gen: v5e
topology: v5e:2x2
jax: 0.10.0
libtpu: 0.0.40
codegen_flags: <defaults>
</compile_context>

<pallas_src>
import functools
import math

import jax
import jax.numpy as jnp
from jax.experimental import pallas as pl
from jax.experimental.pallas import tpu as pltpu


# ----------------------------------------------------------------------------- kernels


def _cv_bern_kernel(w_ref, y_ref, x_ref, o_ref, *, add_y):
    # dist == 'bern': elementwise scale by the scalar weight (optionally + y).
    # Compute in f32 and cast once at the store (matches torch's f32-parameter promotion).
    v = x_ref[...].astype(jnp.float32) * w_ref[0]
    if add_y:
        v = v + y_ref[0]
    o_ref[...] = v.astype(o_ref.dtype)


def _cv_sum_kernel_single(w_ref, y_ref, x_ref, o_ref, *, add_y):
    # dist != 'bern', whole feature dim in one block: no scratch, no init/finalize.
    # Scalar multiply is hoisted out of the reduce (applied once per row).
    s = jnp.sum(x_ref[...].astype(jnp.float32), axis=-1, keepdims=True)
    s = s * w_ref[0]
    if add_y:
        s = s + y_ref[0]
    o_ref[...] = s.astype(o_ref.dtype)


def _cv_sum_kernel_multi(w_ref, y_ref, x_ref, o_ref, acc_ref, *, add_y):
    # dist != 'bern', feature dim split over the last grid axis: accumulate raw row sums
    # in an f32 scratch; scalar multiply (and y add) happen once at finalize.
    k = pl.program_id(1)

    @pl.when(k == 0)
    def _init():
        acc_ref[...] = jnp.zeros_like(acc_ref)

    acc_ref[...] += jnp.sum(x_ref[...].astype(jnp.float32), axis=-1, keepdims=True)

    @pl.when(k == pl.num_programs(1) - 1)
    def _finalize():
        res = acc_ref[...] * w_ref[0]
        if add_y:
            res = res + y_ref[0]
        o_ref[...] = res.astype(o_ref.dtype)


# ----------------------------------------------------------------------------- tiling


def _round_up(a, b):
    return (a + b - 1) // b * b


def _ceil_div(a, b):
    return -(-a // b)


def _chip_budgets():
    """Return (per-x-block target bytes, vmem_limit_bytes, has two TensorCores)."""
    cap = 64 * 1024 * 1024
    try:
        cap = int(getattr(pltpu.get_tpu_info(), "vmem_capacity_bytes", cap))
    except Exception:
        pass
    if cap <= 64 * 1024 * 1024:
        # v7x-class: 64 MiB VMEM per TensorCore, 2 TCs/chip, ~3.2 TB/s HBM.
        return 4 * 1024 * 1024, 44 * 1024 * 1024, True
    # v5e / v6e: 128 MiB VMEM, single TensorCore.
    return 6 * 1024 * 1024, 56 * 1024 * 1024, False


def _choose_tiles(M, D, itemsize, target_bytes, two_cores):
    """Pick (tm, td). td divides D (or == D); tm is either == M (full extent) or a
    multiple of the sublane pack and <= M, so every block shape is legal without padding."""
    pack = {4: 8, 2: 16, 1: 32}.get(itemsize, 8)

    # Lane-dim tile: keep full D unless even a minimal strip blows the budget
    # (only split when D is 128-aligned so td stays a divisor of D).
    td = D
    min_rows = min(max(M, 1), pack)
    if D % 128 == 0:
        while _round_up(td, 128) * itemsize * min_rows > target_bytes and td % 256 == 0:
            td //= 2

    # Budget rows on the *lane-padded* block footprint (important for e.g. D=160 -> 256).
    row_bytes = _round_up(td, 128) * itemsize
    rows_budget = max(pack, (target_bytes // row_bytes) // pack * pack)

    if M <= rows_budget:
        tm = M  # single full-extent row tile
        if two_cores and M > pack:
            # Split into >=2 row tiles so both TensorCores get work (v7x only).
            half = _round_up(_ceil_div(M, 2), pack)
            if half < M:
                tm = half
    else:
        tm = rows_budget
    return tm, td


# ----------------------------------------------------------------------------- wrapper


def control_variate_forward(x, weight, dist="categorical", y=None, *,
                            tile_override=None, force_pallas=False,
                            min_pallas_bytes=256 * 1024):
    """Pallas implementation of ControlVariate.forward.

    x:      arbitrary-rank float array; last dim is the feature dim D.
    weight: (1,) float array (the module's scalar parameter).
    dist:   'bern' -> elementwise output (same shape as x); else -> sum over last axis.
    y:      optional addend (mirrors PyTorch's `if y:` for Python scalars).
    """
    x = jnp.asarray(x)
    w = jnp.asarray(weight).reshape(-1)[:1]
    orig_shape = x.shape
    D = orig_shape[-1] if len(orig_shape) else 1
    M = int(math.prod(orig_shape[:-1])) if len(orig_shape) > 1 else 1
    itemsize = jnp.dtype(x.dtype).itemsize

    # Output dtype follows torch promotion of (x * f32 parameter).
    out_dtype = jnp.result_type(x.dtype, w.dtype)
    out_itemsize = jnp.dtype(out_dtype).itemsize

    # PyTorch's `if y:` uses tensor truthiness; mirror it for Python scalars, otherwise
    # add whenever y is given.
    # TODO(synk): a traced JAX scalar y == 0 is still added (no traced truthiness).
    add_y = y is not None
    if isinstance(y, (bool, int, float)):
        add_y = bool(y)

    reduce_last = dist != "bern"

    # Tiny inputs: pallas_call launch/pipeline priming dominates; let XLA fuse it.
    if not force_pallas and M * D * itemsize < min_pallas_bytes:
        out = x.astype(out_dtype) * w[0].astype(out_dtype)
        if reduce_last:
            out = out.sum(-1)
        if add_y:
            out = out + jnp.asarray(y)
        return out

    x2 = x.reshape(M, D)
    w1 = w.astype(jnp.float32).reshape((1,))
    y1 = (jnp.asarray(y, dtype=jnp.float32).reshape((1,)) if add_y
          else jnp.zeros((1,), dtype=jnp.float32))

    target_bytes, vmem_limit, two_cores = _chip_budgets()
    if tile_override is not None:
        tm, td = tile_override
    else:
        tm, td = _choose_tiles(M, D, itemsize, target_bytes, two_cores)
    assert D % td == 0, "D tile must divide D"
    assert 0 < tm <= M and (tm == M or tm % 8 == 0), "row tile must be legal without padding"

    n_rows = _ceil_div(M, tm)   # ragged last row block is masked by Pallas on writeback
    n_d = D // td
    smem = pl.BlockSpec(memory_space=pltpu.MemorySpace.SMEM)

    if not reduce_last:
        flops = M * D * (2 if add_y else 1)
        bytes_accessed = M * D * (itemsize + out_itemsize) + 8
        out2 = pl.pallas_call(
            functools.partial(_cv_bern_kernel, add_y=add_y),
            out_shape=jax.ShapeDtypeStruct((M, D), out_dtype),
            grid=(n_rows, n_d),
            in_specs=[
                smem,                                         # scalar weight (SMEM)
                smem,                                         # scalar y      (SMEM)
                pl.BlockSpec((tm, td), lambda i, j: (i, j)),  # x tile
            ],
            out_specs=pl.BlockSpec((tm, td), lambda i, j: (i, j)),
            compiler_params=pltpu.CompilerParams(
                dimension_semantics=("parallel", "parallel"),
                vmem_limit_bytes=vmem_limit,
            ),
            cost_estimate=pl.CostEstimate(
                flops=flops, transcendentals=0, bytes_accessed=bytes_accessed),
        )(w1, y1, x2)
        return out2.reshape(orig_shape)

    # ---- sum-over-last-axis path ----
    flops = M * D + M * (2 if add_y else 1)
    bytes_accessed = M * D * itemsize + M * out_itemsize + 8

    if n_d == 1:
        out2 = pl.pallas_call(
            functools.partial(_cv_sum_kernel_single, add_y=add_y),
            out_shape=jax.ShapeDtypeStruct((M, 1), out_dtype),
            grid=(n_rows,),
            in_specs=[
                smem,                                      # scalar weight (SMEM)
                smem,                                      # scalar y      (SMEM)
                pl.BlockSpec((tm, td), lambda i: (i, 0)),  # x tile (full D)
            ],
            out_specs=pl.BlockSpec((tm, 1), lambda i: (i, 0)),
            compiler_params=pltpu.CompilerParams(
                dimension_semantics=("parallel",),
                vmem_limit_bytes=vmem_limit,
            ),
            cost_estimate=pl.CostEstimate(
                flops=flops, transcendentals=0, bytes_accessed=bytes_accessed),
        )(w1, y1, x2)
    else:
        out2 = pl.pallas_call(
            functools.partial(_cv_sum_kernel_multi, add_y=add_y),
            out_shape=jax.ShapeDtypeStruct((M, 1), out_dtype),
            grid=(n_rows, n_d),
            in_specs=[
                smem,                                         # scalar weight (SMEM)
                smem,                                         # scalar y      (SMEM)
                pl.BlockSpec((tm, td), lambda i, k: (i, k)),  # x tile
            ],
            out_specs=pl.BlockSpec((tm, 1), lambda i, k: (i, 0)),
            scratch_shapes=[pltpu.VMEM((tm, 1), jnp.float32)],
            compiler_params=pltpu.CompilerParams(
                dimension_semantics=("parallel", "arbitrary"),
                vmem_limit_bytes=vmem_limit,
            ),
            cost_estimate=pl.CostEstimate(
                flops=flops, transcendentals=0, bytes_accessed=bytes_accessed),
        )(w1, y1, x2)
    return out2.reshape(orig_shape[:-1])


# ----------------------------------------------------------------------------- test


if __name__ == "__main__":
    key = jax.random.PRNGKey(0)
    kw, kx1, kx2 = jax.random.split(key, 3)

    # Module parameter: uniform(-1, 1), shape (1,) like the nn.Parameter.
    weight = jax.random.uniform(kw, (1,), minval=-1.0, maxval=1.0, dtype=jnp.float32)

    # Case 1: 3-D input, D=160 not a multiple of 128, row count 3*10=30 (ragged rows).
    x1 = jax.random.normal(kx1, (3, 10, 160), dtype=jnp.float32)

    out_cat = control_variate_forward(x1, weight, dist="categorical", force_pallas=True)
    out_bern = control_variate_forward(x1, weight, dist="bern", force_pallas=True)
    out_cat_y = control_variate_forward(x1, weight, dist="categorical", y=0.5,
                                        force_pallas=True)

    ref_cat = (x1 * weight[0]).sum(-1)
    ref_bern = x1 * weight[0]
    assert out_cat.shape == (3, 10)
    assert out_bern.shape == (3, 10, 160)
    assert jnp.allclose(out_cat, ref_cat, atol=1e-4, rtol=1e-4)
    assert jnp.allclose(out_bern, ref_bern, atol=1e-6, rtol=1e-6)
    assert jnp.allclose(out_cat_y, ref_cat + 0.5, atol=1e-4, rtol=1e-4)

    # Case 2: multi-step D reduction (td=128 < D=256) with ragged rows (200 % 128 != 0),
    # exercising the pl.when init/finalize accumulator kernel and edge-block masking.
    x2 = jax.random.normal(kx2, (200, 256), dtype=jnp.float32)
    out2 = control_variate_forward(x2, weight, dist="categorical",
                                   tile_override=(128, 128), force_pallas=True)
    assert out2.shape == (200,)
    assert jnp.allclose(out2, (x2 * weight[0]).sum(-1), atol=1e-4, rtol=1e-4)

    # Case 3: default call on a tiny input takes the plain-JAX fallback path.
    out_fb = control_variate_forward(x1, weight, dist="categorical")
    assert jnp.allclose(out_fb, ref_cat, atol=1e-5, rtol=1e-5)

    jax.block_until_ready((out_cat, out_bern, out_cat_y, out2, out_fb))
    print("KERNEL_OK")
</pallas_src>

<mosaic_0001>
module attributes {stable_mosaic.version = 11 : i64} {
  func.func @_cv_sum_kernel_single(%arg0: i32, %arg1: memref<1xf32, #tpu.memory_space<smem>>, %arg2: memref<1xf32, #tpu.memory_space<smem>>, %arg3: memref<16x160xf32, #tpu.memory_space<vmem>>, %arg4: memref<16x1xf32, #tpu.memory_space<vmem>>) attributes {dimension_semantics = [#tpu.dimension_semantics<parallel>], iteration_bounds = array<i64: 2>, scalar_prefetch = 0 : i64, scratch_operands = 0 : i64, tpu.core_type = #tpu.core_type<tc>, window_params = [{transform_indices = @transform_0, window_bounds = array<i64: 1>}, {transform_indices = @transform_1, window_bounds = array<i64: 1>}, {transform_indices = @transform_2, window_bounds = array<i64: 16, 160>}, {transform_indices = @transform_3, window_bounds = array<i64: 16, 1>}]} {
    %c0 = arith.constant 0 : index
    %c0_0 = arith.constant 0 : index
    %0 = vector.load %arg3[%c0, %c0_0] : memref<16x160xf32, #tpu.memory_space<vmem>>, vector<16x160xf32>
    %cst = arith.constant dense<0.000000e+00> : vector<16xf32>
    %1 = vector.multi_reduction <add>, %0, %cst [1] : vector<16x160xf32> to vector<16xf32>
    %2 = vector.shape_cast %1 : vector<16xf32> to vector<16x1xf32>
    %c0_1 = arith.constant 0 : index
    %3 = memref.load %arg1[%c0_1] : memref<1xf32, #tpu.memory_space<smem>>
    %4 = vector.broadcast %3 : f32 to vector<16x1xf32>
    %5 = arith.mulf %2, %4 : vector<16x1xf32>
    %c0_2 = arith.constant 0 : index
    %c0_3 = arith.constant 0 : index
    %6 = vector.load %arg4[%c0_2, %c0_3] : memref<16x1xf32, #tpu.memory_space<vmem>>, vector<16x1xf32>
    tpu.vector_store %arg4[%c0_2, %c0_3], %5 {strides = array<i32>} : memref<16x1xf32, #tpu.memory_space<vmem>>, vector<16x1xf32>,
    return
  }
  func.func @transform_0(%arg0: i32) -> i32 {
    %c0_i32 = arith.constant 0 : i32
    %c0_i32_0 = arith.constant 0 : i32
    return %c0_i32 : i32
  }
  func.func @transform_1(%arg0: i32) -> i32 {
    %c0_i32 = arith.constant 0 : i32
    %c0_i32_0 = arith.constant 0 : i32
    return %c0_i32 : i32
  }
  func.func @transform_2(%arg0: i32) -> (i32, i32) {
    %c0_i32 = arith.constant 0 : i32
    %c0_i32_0 = arith.constant 0 : i32
    return %arg0, %c0_i32 : i32, i32
  }
  func.func @transform_3(%arg0: i32) -> (i32, i32) {
    %c0_i32 = arith.constant 0 : i32
    %c0_i32_0 = arith.constant 0 : i32
    return %arg0, %c0_i32 : i32, i32
  }
}

</mosaic_0001>

<llo_original>
// kernel: tpu_custom_call.1
$region0: #{tpu_custom_call.1}
  #allocation0 [shape = 'u32[]', space=smem, size = 0x4, offset = 0x4, fixed_abs, tag = 'smem constant byte address 0x4 - core index']
  #allocation1 [shape = 'u32[72,128]{1,0:T(1,128)}', space=vmem, size = 0x9000, scoped, tag = 'internal scratch']
  #allocation2 [shape = 'f32[1]{0:T(128)S(6)}', space=smem, size = 0x200, scoped, tag = 'scoped memory for tpu_custom_call.1']
  #allocation3 [shape = 'f32[1]{0:T(128)S(6)}', space=smem, size = 0x200, scoped, tag = 'scoped memory for tpu_custom_call.1']
  %s0 = inlined_call_operand.<no memory space> [shape: f32[1], index: 0, kind: input, shape index: {}]
  %s1 = inlined_call_operand.<no memory space> [shape: f32[1], index: 1, kind: input, shape index: {}]
  %s2 = inlined_call_operand.hbm [shape: f32[30,160], index: 2, kind: input, shape index: {}]
  %s3 = inlined_call_operand.vmem [shape: f32[30,1], index: 3, kind: output, shape index: {}]
  %s4 = sld [smem:[#allocation0]]
  $region49: #{tpu_custom_call.1} parent=0
    _
  %s6 = ssub.s32 1, %s4
  %s7 = scalar_select 0, %s6, %s4
  %8 = sst [smem:[#allocation2]] %s0
  %9 = sst [smem:[#allocation3]] %s1
  $region1: #{tpu_custom_call.1} parent=0
    #allocation4 [shape = 'u8[32768]{0}', space=vmem, size = 0x8000, scoped, tag = 'input window, operand 2']
    #allocation5 [shape = 's32[2]{0}', space=sflag, size = 0x8, scoped, tag = 'scoped memory for tpu_custom_call.1']
    %10 = vsyncpa [#allocation5], 0
    %s11 = scalar_lea.sflag [#allocation5], 1
    %12 = vsyncpa %s11, 0
    loop: start=0, step=1, limit=4
    $region2: #{tpu_custom_call.1} parent=1 // loop_pre_header
      _
    $region3: #{tpu_custom_call.1} parent=1 // loop_header
      %s14 = sphi 0, %s18
      %p15 = scmp.ge.s32.totalorder %s14, 4
      %s22 = sphi 0, %s22
      %s24 = sphi 0, %s22
      %s25 = sphi 0, %s24
      %s39 = sphi 0, %s25
      %s43 = sphi 0, %s43
      %s45 = sphi 0, %s43
      %s46 = sphi 0, %s45
      %s60 = sphi 0, %s46
      %s66 = sphi 0, %s68
      %s69 = sphi 0, %s66
      %s70 = sphi 0, %s69
      %s86 = sphi 0, %s70
      %s92 = sphi 0, %s94
      %s95 = sphi 0, %s92
      %s96 = sphi 0, %s95
      %s112 = sphi 0, %s96
    $region4: #{tpu_custom_call.1} parent=1 // loop_header_branch
      %17 = sbr.rel (%p15) target = $region8
    $region5: #{tpu_custom_call.1} parent=1 // loop_body
      %s19 = ssub.s32 %s14, 1
      %s20 = ssub.s32 %s14, 2
      %s21 = sadd.s32 %s14, 1
      %s23 = sadd.s32 %s22, 1
      %p26 = scmp.eq.s32.totalorder %s14, 1
      %p27 = scmp.ne.s32.totalorder %s22, %s24
      %p28 = scmp.eq.s32.totalorder %s14, 0
      %p29 = por %p27, %p28
      %p30 = scmp.ne.s32.totalorder %s22, %s24
      %p31 = scmp.eq.s32.totalorder %s19, 1
      %p32 = por %p30, %p31
      %p33 = scmp.ne.s32.totalorder %s24, %s25
      %p34 = scmp.eq.s32.totalorder %s19, 0
      %p35 = por %p33, %p34
      %p36 = scmp.ne.s32.totalorder %s24, %s25
      %p37 = scmp.eq.s32.totalorder %s20, 1
      %p38 = por %p36, %p37
      %p40 = scmp.ne.s32.totalorder %s25, %s39
      %p41 = scmp.eq.s32.totalorder %s20, 0
      %p42 = por %p40, %p41
      %s44 = sadd.s32 %s43, 1
      %p47 = scmp.eq.s32.totalorder %s14, 1
      %p48 = scmp.ne.s32.totalorder %s43, %s45
      %p49 = scmp.eq.s32.totalorder %s14, 0
      %p50 = por %p48, %p49
      %p51 = scmp.ne.s32.totalorder %s43, %s45
      %p52 = scmp.eq.s32.totalorder %s19, 1
      %p53 = por %p51, %p52
      %p54 = scmp.ne.s32.totalorder %s45, %s46
      %p55 = scmp.eq.s32.totalorder %s19, 0
      %p56 = por %p54, %p55
      %p57 = scmp.ne.s32.totalorder %s45, %s46
      %p58 = scmp.eq.s32.totalorder %s20, 1
      %p59 = por %p57, %p58
      %p61 = scmp.ne.s32.totalorder %s46, %s60
      %p62 = scmp.eq.s32.totalorder %s20, 0
      %p63 = por %p61, %p62
      %s64 = ssub.s32 %s14, %s21
      %p65 = scmp.eq.s32.totalorder %s64, 0
      %s67 = sadd.s32 %s66, 1
      %s68 = scalar_select %p65, %s66, %s67
      %p71 = pneg %p65
      %p72 = scmp.eq.s32.totalorder %s14, 1
      %p73 = por %p71, %p72
      %p74 = scmp.ne.s32.totalorder %s66, %s69
      %p75 = scmp.eq.s32.totalorder %s14, 0
      %p76 = por %p74, %p75
      %p77 = scmp.ne.s32.totalorder %s66, %s69
      %p78 = scmp.eq.s32.totalorder %s19, 1
      %p79 = por %p77, %p78
      %p80 = scmp.ne.s32.totalorder %s69, %s70
      %p81 = scmp.eq.s32.totalorder %s19, 0
      %p82 = por %p80, %p81
      %p83 = scmp.ne.s32.totalorder %s69, %s70
      %p84 = scmp.eq.s32.totalorder %s20, 1
      %p85 = por %p83, %p84
      %p87 = scmp.ne.s32.totalorder %s70, %s86
      %p88 = scmp.eq.s32.totalorder %s20, 0
      %p89 = por %p87, %p88
      %s90 = ssub.s32 %s14, %s21
      %p91 = scmp.eq.s32.totalorder %s90, 0
      %s93 = sadd.s32 %s92, 1
      %s94 = scalar_select %p91, %s92, %s93
      %p97 = pneg %p91
      %p98 = scmp.eq.s32.totalorder %s14, 1
      %p99 = por %p97, %p98
      %p100 = scmp.ne.s32.totalorder %s92, %s95
      %p101 = scmp.eq.s32.totalorder %s14, 0
      %p102 = por %p100, %p101
      %p103 = scmp.ne.s32.totalorder %s92, %s95
      %p104 = scmp.eq.s32.totalorder %s19, 1
      %p105 = por %p103, %p104
      %p106 = scmp.ne.s32.totalorder %s95, %s96
      %p107 = scmp.eq.s32.totalorder %s19, 0
      %p108 = por %p106, %p107
      %p109 = scmp.ne.s32.totalorder %s95, %s96
      %p110 = scmp.eq.s32.totalorder %s20, 1
      %p111 = por %p109, %p110
      %p113 = scmp.ne.s32.totalorder %s96, %s112
      %p114 = scmp.eq.s32.totalorder %s20, 0
      %p115 = por %p113, %p114
      %p116 = scmp.le.s32.totalorder 1, %s14
      %p117 = scmp.lt.s32.totalorder %s14, 3
      %p118 = pnand %p116, %p117
      %p119 = pneg %p118
      // Predicated region
      $region9: #{tpu_custom_call.1} parent=5 // pred_check
        _
      $region10: #{tpu_custom_call.1} parent=5 // pred_check_branch
        %121 = sbr.rel (%p118) target = $region12
      $region11: #{tpu_custom_call.1} parent=5 // pred_region
        %s122 = ssub.s32 %s14, 1
        // Predicated region
        $region13: #{tpu_custom_call.1} parent=11 // pred_check
          %p123 = pneg %p35
        $region14: #{tpu_custom_call.1} parent=11 // pred_check_branch
          %125 = sbr.rel (%p123) target = $region16
        $region15: #{tpu_custom_call.1} parent=11 // pred_region
          _
        $region16: #{tpu_custom_call.1} parent=11 // pred_fallthru
          _
        // Predicated region
        $region17: #{tpu_custom_call.1} parent=11 // pred_check
          %p126 = pneg %p56
        $region18: #{tpu_custom_call.1} parent=11 // pred_check_branch
          %128 = sbr.rel (%p126) target = $region20
        $region19: #{tpu_custom_call.1} parent=11 // pred_region
          _
        $region20: #{tpu_custom_call.1} parent=11 // pred_fallthru
          _
      $region12: #{tpu_custom_call.1} parent=5 // pred_fallthru
        _
      %p129 = scmp.lt.s32.totalorder %s14, 2
      // Predicated region
      $region21: #{tpu_custom_call.1} parent=5 // pred_check
        %p130 = pneg %p129
      $region22: #{tpu_custom_call.1} parent=5 // pred_check_branch
        %132 = sbr.rel (%p130) target = $region24
      $region23: #{tpu_custom_call.1} parent=5 // pred_region
        // Predicated region
        $region25: #{tpu_custom_call.1} parent=23 // pred_check
          %p133 = pneg %p76
        $region26: #{tpu_custom_call.1} parent=23 // pred_check_branch
          %135 = sbr.rel (%p133) target = $region28
        $region27: #{tpu_custom_call.1} parent=23 // pred_region
          %s136 = sand.u32 %s66, 1
          %s137 = scalar_lea.sflag [#allocation5], %s136
          %s138 = sand.u32 %s66, 1
          %s139 = smul.addr %s138, 32
          %s140 = scalar_lea.vmem [#allocation4], %s139
          %s141 = smul.u32 2, %s14
          %143 = vsyncadd %s137, 0
          %s144 = smul.addr %s141, 2
          %s145 = smul.addr %s144, 8
          %s146 = scalar_lea.hbm %s2, %s145
          %s147 = sshll.u32 %s146, 4
          %s148 = int_to_ptr.hbm [resolvable:$true] %s147
          %s149 = sshll.u32 %s140, 4
          %s150 = int_to_ptr.vmem [resolvable:$true] %s149
          %155 = dma.hbm_to_vmem [thread:$0]  %s148, 512, %s150, %s137, 256, 256, 16
        $region28: #{tpu_custom_call.1} parent=23 // pred_fallthru
          _
      $region24: #{tpu_custom_call.1} parent=5 // pred_fallthru
        _
      %p156 = scmp.le.s32.totalorder 1, %s14
      %p157 = scmp.lt.s32.totalorder %s14, 3
      %p158 = pnand %p156, %p157
      %p159 = pneg %p158
      // Predicated region
      $region29: #{tpu_custom_call.1} parent=5 // pred_check
        _
      $region30: #{tpu_custom_call.1} parent=5 // pred_check_branch
        %161 = sbr.rel (%p158) target = $region32
      $region31: #{tpu_custom_call.1} parent=5 // pred_region
        %s162 = ssub.s32 %s14, 1
        %s163 = sand.u32 %s69, 1
        %s164 = scalar_lea.sflag [#allocation5], %s163
        %s165 = sand.u32 %s69, 1
        %s166 = smul.addr %s165, 32
        %s167 = scalar_lea.vmem [#allocation4], %s166
        // Predicated region
        $region33: #{tpu_custom_call.1} parent=31 // pred_check
          %p168 = pneg %p82
        $region34: #{tpu_custom_call.1} parent=31 // pred_check_branch
          %170 = sbr.rel (%p168) target = $region36
        $region35: #{tpu_custom_call.1} parent=31 // pred_region
          %172 = dma.done %s164, 512
        $region36: #{tpu_custom_call.1} parent=31 // pred_fallthru
          _
        %p173 = pneg %p35
        %p174 = pneg %p32
        %p175 = pneg %p56
        %p176 = pneg %p53
        %s177 = sand.u32 %s69, 1
        %s178 = scalar_lea.sflag [#allocation5], %s177
        %s179 = sand.u32 %s69, 1
        %s180 = smul.addr %s179, 32
        %s181 = scalar_lea.vmem [#allocation4], %s180
        %p182 = pneg %p82
        %p183 = pneg %p79
        %p184 = pneg %p108
        %p185 = pneg %p105
        %s186 = smul.u32 2, %s19
        %p187 = scmp.lt.s32.totalorder %s186, 3
        %s188 = scalar_select %p187, %s186, 3
        %s189 = smul.addr %s188, 8
        %s190 = scalar_lea.vmem %s3, %s189
        %s191 = smul.u32 2, %s19
        %s192 = smul.u32 2, %s19
        %p193 = scmp.lt.s32.totalorder %s192, 3
        %s194 = scalar_select %p193, %s192, 3
        %s195 = smul.addr %s194, 8
        %s196 = scalar_lea.vmem %s3, %s195
        %s197 = smul.u32 2, %s19
        %v198 = vld [vmem:[%s167] sm:$0xff]
        %v199 = vld [vmem:[%s167 + $0x8] sm:$0xff]
        %v200 = vld [vmem:[%s167 + $0x10] sm:$0xff]
        %v201 = vld [vmem:[%s167 + $0x18] sm:$0xff]
        %vm202 = vcmask 261120
        %v203 = vsel %vm202, %v199, 0.0
        %v204 = vadd.f32 %v198, %v203
        %205 = vadd.xlane.f32.xlu0 %v204
        %v206 = vpop.xlane.xlu0 %205
        %v207 = vsel %vm202, %v201, 0.0
        %v208 = vadd.f32 %v200, %v207
        %209 = vadd.xlane.f32.xlu0 %v208
        %v210 = vpop.xlane.xlu0 %209
        %s211 = sld [smem:[#allocation2]]
        %v212 = vstv %s211
        %v213 = vmul.f32 %v206, %v212
        %v214 = vmul.f32 %v210, %v212
        %vm215 = vcmask 7168
        %216 = vst.msk [vmem:[%s196] sm:$0xff] %vm215, %v213
        %217 = vst.msk [vmem:[%s196 + $0x8] sm:$0xff] %vm215, %v214
        %s218 = smul.u32 2, %s19
        %p219 = scmp.lt.s32.totalorder %s218, 3
        %s220 = scalar_select %p219, %s218, 3
        %s221 = smul.addr %s220, 8
        %s222 = scalar_lea.vmem %s3, %s221
        // Predicated region
        $region37: #{tpu_custom_call.1} parent=31 // pred_check
          %p223 = pneg %p105
        $region38: #{tpu_custom_call.1} parent=31 // pred_check_branch
          %225 = sbr.rel (%p223) target = $region40
        $region39: #{tpu_custom_call.1} parent=31 // pred_region
          %s226 = smul.u32 2, %s19
        $region40: #{tpu_custom_call.1} parent=31 // pred_fallthru
          _
      $region32: #{tpu_custom_call.1} parent=5 // pred_fallthru
        _
      %p227 = scmp.le.s32.totalorder 2, %s14
      // Predicated region
      $region41: #{tpu_custom_call.1} parent=5 // pred_check
        %p228 = pneg %p227
      $region42: #{tpu_custom_call.1} parent=5 // pred_check_branch
        %230 = sbr.rel (%p228) target = $region44
      $region43: #{tpu_custom_call.1} parent=5 // pred_region
        %s231 = ssub.s32 %s14, 2
        // Predicated region
        $region45: #{tpu_custom_call.1} parent=43 // pred_check
          %p232 = pneg %p111
        $region46: #{tpu_custom_call.1} parent=43 // pred_check_branch
          %234 = sbr.rel (%p232) target = $region48
        $region47: #{tpu_custom_call.1} parent=43 // pred_region
          %s235 = smul.u32 2, %s20
          %p236 = scmp.lt.s32.totalorder %s235, 3
          %s237 = scalar_select %p236, %s235, 3
          %s238 = smul.addr %s237, 8
          %s239 = scalar_lea.vmem %s3, %s238
        $region48: #{tpu_custom_call.1} parent=43 // pred_fallthru
          _
      $region44: #{tpu_custom_call.1} parent=5 // pred_fallthru
        _
    $region6: #{tpu_custom_call.1} parent=1 // loop_footer
      %s18 = sadd.s32 1, %s14
    $region7: #{tpu_custom_call.1} parent=1 // loop_footer_branch
      %13 = sbr.rel target = $region3
    $region8: #{tpu_custom_call.1} parent=1 // loop_exit
      _
    %240 = vsyncpa [#allocation5], 1
    %s241 = scalar_lea.sflag [#allocation5], 1
    %242 = vsyncpa %s241, 1

</llo_original>
